<compile_context>
chip_gen: v7x
topology: tpu7x:2x2x1
jax: 0.10.0
libtpu: 0.0.40
codegen_flags: <defaults>
</compile_context>

<pallas_src>
import math

import jax
import jax.numpy as jnp
import numpy as np
from jax.experimental import pallas as pl
from jax.experimental.pallas import tpu as pltpu


def _round_up(x, m):
    return (x + m - 1) // m * m


# ----------------------------------------------------------------------------
# Tiled Pallas linear (matmul + bias) kernel
# ----------------------------------------------------------------------------
def _linear_kernel(x_ref, w_ref, b_ref, o_ref):
    o_ref[...] = (
        jnp.dot(x_ref[...], w_ref[...], preferred_element_type=jnp.float32)
        + b_ref[...]
    )


def pallas_linear(x, w, b, tile_m=256):
    M, K = x.shape
    K2, Nout = w.shape
    assert K == K2
    tile_m = min(tile_m, _round_up(M, 8))
    Mp = _round_up(M, tile_m)
    xp = jnp.pad(x, ((0, Mp - M), (0, 0))) if Mp != M else x
    out = pl.pallas_call(
        _linear_kernel,
        out_shape=jax.ShapeDtypeStruct((Mp, Nout), jnp.float32),
        grid=(Mp // tile_m,),
        in_specs=[
            pl.BlockSpec((tile_m, K), lambda i: (i, 0)),
            pl.BlockSpec((K, Nout), lambda i: (0, 0)),
            pl.BlockSpec((1, Nout), lambda i: (0, 0)),
        ],
        out_specs=pl.BlockSpec((tile_m, Nout), lambda i: (i, 0)),
        compiler_params=pltpu.CompilerParams(
            dimension_semantics=("parallel",)),
    )(xp, w, b.reshape(1, Nout))
    return out[:M] if Mp != M else out


# ----------------------------------------------------------------------------
# Deformable-attention core kernel
# softmax + bilinear one-hot gather (per level, per head) + MXU weighted sum.
# One grid program per (batch, Lq tile); all heads handled inside the program
# so the output block is lane-dense (Lq_tile, d_model).
# ----------------------------------------------------------------------------
def make_deform_core_kernel(spatial_shapes, level_starts, n_levels, n_points,
                            n_heads, d_head):
    LP = n_levels * n_points

    def kernel(value_ref, loc_ref, attn_ref, out_ref):
        # value_ref: (Len_in, d_model)        one batch element (head-major cols)
        # loc_ref:   (Lq_tile, H*L*P*2)       (x, y) pairs, head-major
        # attn_ref:  (Lq_tile, H*L*P)         attention logits, head-major
        # out_ref:   (Lq_tile, d_model)       lane-dense output
        locs = loc_ref[...]
        logits = attn_ref[...]
        lq = logits.shape[0]

        head_outs = []
        for h in range(n_heads):
            # softmax over this head's (levels*points) logits
            lg = logits[:, h * LP:(h + 1) * LP]
            m = jnp.max(lg, axis=-1, keepdims=True)
            e = jnp.exp(lg - m)
            attw = e * pl.reciprocal(jnp.sum(e, axis=-1, keepdims=True),
                                     approx=True)

            acc = jnp.zeros((lq, d_head), jnp.float32)
            for l in range(n_levels):
                Hl, Wl = spatial_shapes[l]
                HW = Hl * Wl
                start = level_starts[l]
                lane = jax.lax.broadcasted_iota(jnp.int32, (lq, HW), 1)
                A = jnp.zeros((lq, HW), jnp.float32)   # level-local gather matrix
                for p in range(n_points):
                    c = (h * LP + l * n_points + p) * 2
                    x = locs[:, c:c + 1]               # (lq, 1)
                    y = locs[:, c + 1:c + 2]
                    aw = attw[:, l * n_points + p:l * n_points + p + 1]

                    # grid_sample(align_corners=False): pix = loc * size - 0.5
                    px = x * Wl - 0.5
                    py = y * Hl - 0.5
                    x0 = jnp.floor(px)
                    y0 = jnp.floor(py)
                    dx = px - x0
                    dy = py - y0
                    x0i = x0.astype(jnp.int32)
                    y0i = y0.astype(jnp.int32)

                    # TODO(synk): move 3 of the 4 corner one-hots to the XLU via
                    # pltpu.roll (+1, +Wl, +Wl+1) with wrap/validity re-masking.
                    corners = [
                        (x0i,     y0i,     (1.0 - dx) * (1.0 - dy)),
                        (x0i + 1, y0i,     dx * (1.0 - dy)),
                        (x0i,     y0i + 1, (1.0 - dx) * dy),
                        (x0i + 1, y0i + 1, dx * dy),
                    ]
                    for cx, cy, wgt in corners:
                        valid = (cx >= 0) & (cx < Wl) & (cy >= 0) & (cy < Hl)
                        idx = jnp.where(valid, cy * Wl + cx, -1)  # -1 never hits iota
                        w = jnp.where(valid, wgt * aw, 0.0)       # zero-padding mode
                        A = A + jnp.where(lane == idx, w, 0.0)

                v_slab = value_ref[pl.ds(start, HW), pl.ds(h * d_head, d_head)]
                # bf16 operands on the MXU, f32 accumulation
                acc = acc + jnp.dot(A.astype(jnp.bfloat16),
                                    v_slab.astype(jnp.bfloat16),
                                    preferred_element_type=jnp.float32)
            head_outs.append(acc)

        out_ref[...] = jnp.concatenate(head_outs, axis=-1).astype(out_ref.dtype)

    return kernel


# ----------------------------------------------------------------------------
# Parameter init (matches MSDeformAttn._reset_parameters)
# ----------------------------------------------------------------------------
def init_params(key, d_model, n_levels, n_heads, n_points):
    k1, k2 = jax.random.split(key)

    def xavier(k, fan_in, fan_out):
        a = math.sqrt(6.0 / (fan_in + fan_out))
        return jax.random.uniform(k, (fan_in, fan_out), jnp.float32, -a, a)

    thetas = jnp.arange(n_heads, dtype=jnp.float32) * (2.0 * math.pi / n_heads)
    grid = jnp.stack([jnp.cos(thetas), jnp.sin(thetas)], -1)            # (H, 2)
    grid = grid / jnp.max(jnp.abs(grid), axis=-1, keepdims=True)
    grid = jnp.tile(grid[:, None, None, :], (1, n_levels, n_points, 1))  # (H,L,P,2)
    grid = grid * jnp.arange(1, n_points + 1, dtype=jnp.float32)[None, None, :, None]
    b_off = grid.reshape(-1)

    return dict(
        w_off=jnp.zeros((d_model, n_heads * n_levels * n_points * 2), jnp.float32),
        b_off=b_off,
        w_attn=jnp.zeros((d_model, n_heads * n_levels * n_points), jnp.float32),
        b_attn=jnp.zeros((n_heads * n_levels * n_points,), jnp.float32),
        w_value=xavier(k1, d_model, d_model),
        b_value=jnp.zeros((d_model,), jnp.float32),
        w_out=xavier(k2, d_model, d_model),
        b_out=jnp.zeros((d_model,), jnp.float32),
    )


# ----------------------------------------------------------------------------
# Full forward (Pallas path)
# ----------------------------------------------------------------------------
def ms_deform_attn_forward(params, query, reference_points, input_flatten,
                           spatial_shapes, level_start_index,
                           n_heads, n_levels, n_points,
                           input_padding_mask=None, lq_tile=128):
    N, Lq, C = query.shape
    _, Len_in, _ = input_flatten.shape
    d_model = C
    d_head = d_model // n_heads
    LP = n_levels * n_points
    HLP = n_heads * LP
    assert sum(h * w for h, w in spatial_shapes) == Len_in

    # ---- value projection (tiled Pallas matmul); stays in (N, Len_in, d_model)
    value = pallas_linear(input_flatten.reshape(N * Len_in, C),
                          params["w_value"], params["b_value"])
    value = value.reshape(N, Len_in, d_model)
    if input_padding_mask is not None:
        value = jnp.where(input_padding_mask[:, :, None], 0.0, value)

    # ---- fused sampling-offset + attention-logit projection on query
    w_q = jnp.concatenate([params["w_off"], params["w_attn"]], axis=1)
    b_q = jnp.concatenate([params["b_off"], params["b_attn"]], axis=0)
    qp = pallas_linear(query.reshape(N * Lq, C), w_q, b_q)
    off = qp[:, :HLP * 2].reshape(N, Lq, n_heads, n_levels, n_points, 2)
    attn_logits = qp[:, HLP * 2:].reshape(N, Lq, HLP)

    shapes_arr = jnp.asarray(spatial_shapes, jnp.float32)                    # (L, 2) = (H, W)
    offset_normalizer = jnp.stack([shapes_arr[:, 1], shapes_arr[:, 0]], -1)  # (W, H)
    if reference_points.shape[-1] == 2:
        sampling_locations = (reference_points[:, :, None, :, None, :]
                              + off / offset_normalizer[None, None, None, :, None, :])
    elif reference_points.shape[-1] == 4:
        sampling_locations = (reference_points[:, :, None, :, None, :2]
                              + off / n_points
                              * reference_points[:, :, None, :, None, 2:] * 0.5)
    else:
        raise ValueError("reference_points last dim must be 2 or 4")
    loc_flat = sampling_locations.reshape(N, Lq, HLP * 2)   # contiguous reshape only
    attn_flat = attn_logits                                 # (N, Lq, HLP)

    # ---- Lq tiling (+ zero padding so any Lq works); block dim must be %8
    lq_tile = min(lq_tile, _round_up(Lq, 8))
    Lq_pad = _round_up(Lq, lq_tile)
    if Lq_pad != Lq:
        pad = ((0, 0), (0, Lq_pad - Lq), (0, 0))
        loc_flat = jnp.pad(loc_flat, pad)
        attn_flat = jnp.pad(attn_flat, pad)

    kernel = make_deform_core_kernel(spatial_shapes, level_start_index,
                                     n_levels, n_points, n_heads, d_head)

    # rough per-step VMEM budget (double-buffered blocks + one-hot scratch);
    # clamp to <= 64 MiB so the same code fits v7x's smaller physical VMEM.
    max_hw = max(h * w for h, w in spatial_shapes)
    vmem_est = (2 * 4 * (Len_in * d_model + lq_tile * HLP * 2
                         + lq_tile * HLP + lq_tile * d_model)
                + 8 * 4 * lq_tile * max_hw)
    vmem_limit = int(min(max(2 * vmem_est, 32 * 2 ** 20), 64 * 2 ** 20))

    sum_hw = sum(h * w for h, w in spatial_shapes)
    cost = pl.CostEstimate(
        flops=2 * N * Lq_pad * n_heads * (sum_hw * d_head
                                          + 4 * n_levels * n_points * 8),
        transcendentals=N * Lq_pad * HLP,
        bytes_accessed=4 * (value.size + loc_flat.size + attn_flat.size
                            + N * Lq_pad * d_model),
    )

    core_out = pl.pallas_call(
        kernel,
        out_shape=jax.ShapeDtypeStruct((N, Lq_pad, d_model), jnp.float32),
        grid=(N, Lq_pad // lq_tile),
        in_specs=[
            pl.BlockSpec((None, Len_in, d_model), lambda n, q: (n, 0, 0)),
            pl.BlockSpec((None, lq_tile, HLP * 2), lambda n, q: (n, q, 0)),
            pl.BlockSpec((None, lq_tile, HLP), lambda n, q: (n, q, 0)),
        ],
        out_specs=pl.BlockSpec((None, lq_tile, d_model), lambda n, q: (n, q, 0)),
        compiler_params=pltpu.CompilerParams(
            dimension_semantics=("parallel", "parallel"),
            vmem_limit_bytes=vmem_limit),
        cost_estimate=cost,
    )(value, loc_flat, attn_flat)

    out = core_out[:, :Lq]
    out = pallas_linear(out.reshape(N * Lq, d_model),
                        params["w_out"], params["b_out"]).reshape(N, Lq, d_model)
    return out


# ----------------------------------------------------------------------------
# Pure-JAX reference (independent gather path) for correctness checking
# ----------------------------------------------------------------------------
def ref_forward(params, query, reference_points, input_flatten,
                spatial_shapes, level_start_index,
                n_heads, n_levels, n_points, input_padding_mask=None):
    N, Lq, C = query.shape
    _, Len_in, _ = input_flatten.shape
    d_head = C // n_heads

    value = input_flatten @ params["w_value"] + params["b_value"]
    if input_padding_mask is not None:
        value = jnp.where(input_padding_mask[..., None], 0.0, value)
    value = value.reshape(N, Len_in, n_heads, d_head)

    off = (query @ params["w_off"] + params["b_off"]).reshape(
        N, Lq, n_heads, n_levels, n_points, 2)
    attn = (query @ params["w_attn"] + params["b_attn"]).reshape(
        N, Lq, n_heads, n_levels * n_points)
    attn = jax.nn.softmax(attn, axis=-1).reshape(N, Lq, n_heads, n_levels, n_points)

    shapes_arr = jnp.asarray(spatial_shapes, jnp.float32)
    normalizer = jnp.stack([shapes_arr[:, 1], shapes_arr[:, 0]], -1)
    if reference_points.shape[-1] == 2:
        loc = (reference_points[:, :, None, :, None, :]
               + off / normalizer[None, None, None, :, None, :])
    else:
        loc = (reference_points[:, :, None, :, None, :2]
               + off / n_points * reference_points[:, :, None, :, None, 2:] * 0.5)

    out = jnp.zeros((N, n_heads, Lq, d_head), jnp.float32)
    for l, (Hl, Wl) in enumerate(spatial_shapes):
        start = level_start_index[l]
        v_l = value[:, start:start + Hl * Wl]                      # (N, HW, Hh, D)
        v_l = jnp.transpose(v_l, (0, 2, 1, 3))                     # (N, Hh, HW, D)
        x = jnp.transpose(loc[:, :, :, l, :, 0], (0, 2, 1, 3)) * Wl - 0.5   # (N,Hh,Lq,P)
        y = jnp.transpose(loc[:, :, :, l, :, 1], (0, 2, 1, 3)) * Hl - 0.5
        aw = jnp.transpose(attn[:, :, :, l, :], (0, 2, 1, 3))
        x0 = jnp.floor(x); y0 = jnp.floor(y)
        dx = x - x0; dy = y - y0
        x0i = x0.astype(jnp.int32); y0i = y0.astype(jnp.int32)
        for cx, cy, w in [(x0i, y0i, (1 - dx) * (1 - dy)),
                          (x0i + 1, y0i, dx * (1 - dy)),
                          (x0i, y0i + 1, (1 - dx) * dy),
                          (x0i + 1, y0i + 1, dx * dy)]:
            valid = (cx >= 0) & (cx < Wl) & (cy >= 0) & (cy < Hl)
            idx = jnp.clip(cy * Wl + cx, 0, Hl * Wl - 1)
            g = jax.vmap(jax.vmap(lambda vb, ib: vb[ib]))(v_l, idx)  # (N,Hh,Lq,P,D)
            out = out + jnp.sum(g * (w * aw * valid)[..., None], axis=3)
    out = jnp.transpose(out, (0, 2, 1, 3)).reshape(N, Lq, C)
    return out @ params["w_out"] + params["b_out"]


# ----------------------------------------------------------------------------
if __name__ == "__main__":
    d_model, n_levels, n_heads, n_points = 32, 4, 4, 4
    spatial_shapes = ((8, 8), (4, 4), (2, 2), (1, 1))           # (H_l, W_l)
    level_start_index = (0, 64, 80, 84)
    Len_in = sum(h * w for h, w in spatial_shapes)              # 85
    N, Lq = 2, 200            # Lq chosen to exercise both q-tiling and padding

    key = jax.random.PRNGKey(0)
    kp, kq, kr, kf = jax.random.split(key, 4)
    params = init_params(kp, d_model, n_levels, n_heads, n_points)

    query = jax.random.normal(kq, (N, Lq, d_model), jnp.float32)
    reference_points = jax.random.uniform(kr, (N, Lq, n_levels, 2), jnp.float32)
    input_flatten = jax.random.normal(kf, (N, Len_in, d_model), jnp.float32)
    input_padding_mask = jnp.zeros((N, Len_in), bool).at[:, -1].set(True)

    out = ms_deform_attn_forward(
        params, query, reference_points, input_flatten,
        spatial_shapes, level_start_index,
        n_heads=n_heads, n_levels=n_levels, n_points=n_points,
        input_padding_mask=input_padding_mask, lq_tile=128)
    out = jax.block_until_ready(out)
    assert out.shape == (N, Lq, d_model)

    ref = ref_forward(
        params, query, reference_points, input_flatten,
        spatial_shapes, level_start_index,
        n_heads=n_heads, n_levels=n_levels, n_points=n_points,
        input_padding_mask=input_padding_mask)
    # bf16 MXU operands (f32 accumulation) -> slightly relaxed tolerance
    np.testing.assert_allclose(np.asarray(out), np.asarray(ref),
                               rtol=3e-2, atol=3e-2)
    print("KERNEL_OK")
</pallas_src>

<mosaic_0001>
module attributes {stable_mosaic.version = 11 : i64} {
  func.func @_linear_kernel(%arg0: i32, %arg1: memref<176x32xf32, #tpu.memory_space<vmem>>, %arg2: memref<32x32xf32, #tpu.memory_space<vmem>>, %arg3: memref<1x32xf32, #tpu.memory_space<vmem>>, %arg4: memref<176x32xf32, #tpu.memory_space<vmem>>) attributes {dimension_semantics = [#tpu.dimension_semantics<parallel>], iteration_bounds = array<i64: 1>, scalar_prefetch = 0 : i64, scratch_operands = 0 : i64, tpu.core_type = #tpu.core_type<tc>, window_params = [{transform_indices = @transform_0, window_bounds = array<i64: 176, 32>}, {pipeline_mode = #tpu.pipeline_mode<synchronous>, transform_indices = @transform_1, window_bounds = array<i64: 32, 32>}, {pipeline_mode = #tpu.pipeline_mode<synchronous>, transform_indices = @transform_2, window_bounds = array<i64: 1, 32>}, {transform_indices = @transform_3, window_bounds = array<i64: 176, 32>}]} {
    %c0 = arith.constant 0 : index
    %c0_0 = arith.constant 0 : index
    %0 = vector.load %arg1[%c0, %c0_0] : memref<176x32xf32, #tpu.memory_space<vmem>>, vector<176x32xf32>
    %c0_1 = arith.constant 0 : index
    %c0_2 = arith.constant 0 : index
    %1 = vector.load %arg2[%c0_1, %c0_2] : memref<32x32xf32, #tpu.memory_space<vmem>>, vector<32x32xf32>
    %cst = arith.constant dense<0.000000e+00> : vector<176x32xf32>
    %2 = tpu.matmul %0, %1, %cst {dimension_numbers = #tpu.dot_dimension_numbers<[1], [0], [0], [1], [0, 0, 1, 1], [], []>} : vector<176x32xf32>, vector<32x32xf32>, vector<176x32xf32> -> vector<176x32xf32>
    %c0_3 = arith.constant 0 : index
    %c0_4 = arith.constant 0 : index
    %3 = vector.load %arg3[%c0_3, %c0_4] : memref<1x32xf32, #tpu.memory_space<vmem>>, vector<1x32xf32>
    %4 = vector.broadcast %3 : vector<1x32xf32> to vector<176x32xf32>
    %5 = arith.addf %2, %4 : vector<176x32xf32>
    %c0_5 = arith.constant 0 : index
    %c0_6 = arith.constant 0 : index
    %6 = vector.load %arg4[%c0_5, %c0_6] : memref<176x32xf32, #tpu.memory_space<vmem>>, vector<176x32xf32>
    tpu.vector_store %arg4[%c0_5, %c0_6], %5 {strides = array<i32>} : memref<176x32xf32, #tpu.memory_space<vmem>>, vector<176x32xf32>,
    return
  }
  func.func @transform_0(%arg0: i32) -> (i32, i32) {
    %c0_i32 = arith.constant 0 : i32
    %c0_i32_0 = arith.constant 0 : i32
    return %arg0, %c0_i32 : i32, i32
  }
  func.func @transform_1(%arg0: i32) -> (i32, i32) {
    %c0_i32 = arith.constant 0 : i32
    %c0_i32_0 = arith.constant 0 : i32
    %c0_i32_1 = arith.constant 0 : i32
    return %c0_i32, %c0_i32_0 : i32, i32
  }
  func.func @transform_2(%arg0: i32) -> (i32, i32) {
    %c0_i32 = arith.constant 0 : i32
    %c0_i32_0 = arith.constant 0 : i32
    %c0_i32_1 = arith.constant 0 : i32
    return %c0_i32, %c0_i32_0 : i32, i32
  }
  func.func @transform_3(%arg0: i32) -> (i32, i32) {
    %c0_i32 = arith.constant 0 : i32
    %c0_i32_0 = arith.constant 0 : i32
    return %arg0, %c0_i32 : i32, i32
  }
}

</mosaic_0001>

<llo_original>
// kernel: tpu_custom_call.1
$region0: #{tpu_custom_call.1}
  #allocation0 [shape = 'u32[]', space=smem, size = 0x4, offset = 0x4, fixed_abs, tag = 'smem constant byte address 0x4 - core index']
  #allocation1 [shape = 'u32[144,128]{1,0:T(1,128)}', space=vmem, size = 0x12000, scoped, tag = 'internal scratch']
  %s0 = inlined_call_operand.vmem [shape: f32[176,32], index: 0, kind: input, shape index: {}]
  %s1 = inlined_call_operand.vmem [shape: f32[32,32], index: 1, kind: input, shape index: {}]
  %s2 = inlined_call_operand.vmem [shape: f32[1,32], index: 2, kind: input, shape index: {}]
  %s3 = inlined_call_operand.vmem [shape: f32[176,32], index: 3, kind: output, shape index: {}]
  %s4 = sld [smem:[#allocation0]]
  $region22: #{tpu_custom_call.1} parent=0
    _
  %s6 = ssub.s32 1, %s4
  %s7 = scalar_select 0, %s6, %s4
  // Predicated region
  $region2: #{tpu_custom_call.1} parent=0 // pred_check
    _
  $region3: #{tpu_custom_call.1} parent=0 // pred_check_branch
    %9 = sbr.rel (0) target = $region5
  $region4: #{tpu_custom_call.1} parent=0 // pred_region
    _
  $region5: #{tpu_custom_call.1} parent=0 // pred_fallthru
    _
  // Predicated region
  $region6: #{tpu_custom_call.1} parent=0 // pred_check
    _
  $region7: #{tpu_custom_call.1} parent=0 // pred_check_branch
    %11 = sbr.rel (0) target = $region9
  $region8: #{tpu_custom_call.1} parent=0 // pred_region
    _
  $region9: #{tpu_custom_call.1} parent=0 // pred_fallthru
    _
  // Predicated region
  $region10: #{tpu_custom_call.1} parent=0 // pred_check
    _
  $region11: #{tpu_custom_call.1} parent=0 // pred_check_branch
    %13 = sbr.rel (0) target = $region13
  $region12: #{tpu_custom_call.1} parent=0 // pred_region
    _
  $region13: #{tpu_custom_call.1} parent=0 // pred_fallthru
    _
  %v14 = vld [vmem:[%s0] sm:$0xff]
  %v15 = vld [vmem:[%s0 + $0x8] sm:$0xff]
  %v16 = vld [vmem:[%s0 + $0x10] sm:$0xff]
  %v17 = vld [vmem:[%s0 + $0x18] sm:$0xff]
  %v18 = vld [vmem:[%s0 + $0x20] sm:$0xff]
  %v19 = vld [vmem:[%s0 + $0x28] sm:$0xff]
  %v20 = vld [vmem:[%s0 + $0x30] sm:$0xff]
  %v21 = vld [vmem:[%s0 + $0x38] sm:$0xff]
  %v22 = vld [vmem:[%s0 + $0x40] sm:$0xff]
  %v23 = vld [vmem:[%s0 + $0x48] sm:$0xff]
  %v24 = vld [vmem:[%s0 + $0x50] sm:$0xff]
  %v25 = vld [vmem:[%s0 + $0x58] sm:$0xff]
  %v26 = vld [vmem:[%s0 + $0x60] sm:$0xff]
  %v27 = vld [vmem:[%s0 + $0x68] sm:$0xff]
  %v28 = vld [vmem:[%s0 + $0x70] sm:$0xff]
  %v29 = vld [vmem:[%s0 + $0x78] sm:$0xff]
  %v30 = vld [vmem:[%s0 + $0x80] sm:$0xff]
  %v31 = vld [vmem:[%s0 + $0x88] sm:$0xff]
  %v32 = vld [vmem:[%s0 + $0x90] sm:$0xff]
  %v33 = vld [vmem:[%s0 + $0x98] sm:$0xff]
  %v34 = vld [vmem:[%s0 + $0xa0] sm:$0xff]
  %v35 = vld [vmem:[%s0 + $0xa8] sm:$0xff]
  %v36 = vld [vmem:[%s1] sm:$0xff]
  %v37 = vld [vmem:[%s1 + $0x8] sm:$0xff]
  %v38 = vld [vmem:[%s1 + $0x10] sm:$0xff]
  %v39 = vld [vmem:[%s1 + $0x18] sm:$0xff]
  %v40 = vld [vmem:[%s2] sm:$0x1]
  %v42 = vlaneseq
  %v43 = vshrl.u32 %v42, 7
  %v44 = vsub.s32 0, %v43
  %v45 = vrot.slane %v40, %v44
  %vm47 = vcmask 261120
  %v49 = vsel %vm47, %v14, 0
  %v52 = vsel %vm47, %v15, 0
  %v55 = vsel %vm47, %v16, 0
  %v58 = vsel %vm47, %v17, 0
  %v61 = vsel %vm47, %v18, 0
  %v64 = vsel %vm47, %v19, 0
  %v67 = vsel %vm47, %v20, 0
  %v70 = vsel %vm47, %v21, 0
  %v73 = vsel %vm47, %v22, 0
  %v76 = vsel %vm47, %v23, 0
  %v79 = vsel %vm47, %v24, 0
  %v82 = vsel %vm47, %v25, 0
  %v85 = vsel %vm47, %v26, 0
  %v88 = vsel %vm47, %v27, 0
  %v91 = vsel %vm47, %v28, 0
  %v94 = vsel %vm47, %v29, 0
  %v97 = vsel %vm47, %v30, 0
  %v100 = vsel %vm47, %v31, 0
  %v103 = vsel %vm47, %v32, 0
  %v106 = vsel %vm47, %v33, 0
  %v109 = vsel %vm47, %v34, 0
  %v112 = vsel %vm47, %v35, 0
  %114 = vmatprep.subr.mxu0 0.0
  %115 = vmatpush1.msra.mxu0 %v36
  %116 = vmatprep.subr.mxu0 0.0
  %117 = vmatpush1.msra.mxu0 %v37
  %118 = vmatprep.subr.mxu0 0.0
  %119 = vmatpush1.msra.mxu0 %v38
  %120 = vmatprep.subr.mxu0 0.0
  %121 = vmatpush1.msra.mxu0 %v39
  %122 = vmatprep.subr.mxu0 0.0
  %123 = vmatpush1.msra.mxu0 0.0
  %124 = vmatprep.subr.mxu0 0.0
  %125 = vmatpush1.msra.mxu0 0.0
  %126 = vmatprep.subr.mxu0 0.0
  %127 = vmatpush1.msra.mxu0 0.0
  %128 = vmatprep.subr.mxu0 0.0
  %129 = vmatpush1.msra.mxu0 0.0
  %130 = vmatprep.subr.mxu0 0.0
  %131 = vmatpush1.msra.mxu0 0.0
  %132 = vmatprep.subr.mxu0 0.0
  %133 = vmatpush1.msra.mxu0 0.0
  %134 = vmatprep.subr.mxu0 0.0
  %135 = vmatpush1.msra.mxu0 0.0
  %136 = vmatprep.subr.mxu0 0.0
  %137 = vmatpush1.msra.mxu0 0.0
  %138 = vmatprep.subr.mxu0 0.0
  %139 = vmatpush1.msra.mxu0 0.0
  %140 = vmatprep.subr.mxu0 0.0
  %141 = vmatpush1.msra.mxu0 0.0
  %142 = vmatprep.subr.mxu0 0.0
  %143 = vmatpush1.msra.mxu0 0.0
  %144 = vmatprep.subr.mxu0 0.0
  %145 = vmatpush1.msra.mxu0 0.0
  %146 = vmatprep.subr.mxu0 0.0
  %147 = vmatpush1.msra.mxu0 0.0
  %148 = vmatprep.subr.mxu0 0.0
  %149 = vmatpush1.msra.mxu0 0.0
  %150 = vmatprep.subr.mxu0 0.0
  %151 = vmatpush1.msra.mxu0 0.0
  %152 = vmatprep.subr.mxu0 0.0
  %153 = vmatpush1.msra.mxu0 0.0
  %154 = vmatprep.subr.mxu0 0.0
  %155 = vmatpush1.msra.mxu0 0.0
  %156 = vmatprep.subr.mxu0 0.0
  %157 = vmatpush1.msra.mxu0 0.0
  %158 = vmatprep.subr.mxu0 0.0
  %159 = vmatpush1.msra.mxu0 0.0
  %160 = vmatprep.subr.mxu0 0.0
  %161 = vmatpush1.msra.mxu0 0.0
  %162 = vmatprep.subr.mxu0 0.0
  %163 = vmatpush1.msra.mxu0 0.0
  %164 = vmatprep.subr.mxu0 0.0
  %165 = vmatpush1.msra.mxu0 0.0
  %166 = vmatprep.subr.mxu0 0.0
  %167 = vmatpush1.msra.mxu0 0.0
  %168 = vmatprep.subr.mxu0 0.0
  %169 = vmatpush1.msra.mxu0 0.0
  %170 = vmatprep.subr.mxu0 0.0
  %171 = vmatpush1.msra.mxu0 0.0
  %172 = vmatprep.subr.mxu0 0.0
  %173 = vmatpush1.msra.mxu0 0.0
  %174 = vmatprep.subr.mxu0 0.0
  %175 = vmatpush1.msra.mxu0 0.0
  %176 = vmatprep.subr.mxu0 0.0
  %177 = vmatpush1.msra.mxu0 0.0
  %178 = vmatprep.mubr.f32.mxu0 0.0
  %179 = vmatmul.mubr.f32.gmra.mrb[0].mxu0 %v49
  %v180 = vpop.f32.mrb[0].mxu0
  %v181 = vadd.f32 %v45, %v180
  %v182 = vpop.f32.mrb[0].mxu0
  %183 = vmatprep.mubr.f32.mxu0 0.0
  %184 = vmatmul.mubr.f32.gmra.mrb[0].mxu0 %v52
  %v185 = vpop.f32.mrb[0].mxu0
  %v186 = vadd.f32 %v45, %v185
  %v187 = vpop.f32.mrb[0].mxu0
  %188 = vmatprep.mubr.f32.mxu0 0.0
  %189 = vmatmul.mubr.f32.gmra.mrb[0].mxu0 %v55
  %v190 = vpop.f32.mrb[0].mxu0
  %v191 = vadd.f32 %v45, %v190
  %v192 = vpop.f32.mrb[0].mxu0
  %193 = vmatprep.mubr.f32.mxu0 0.0
  %194 = vmatmul.mubr.f32.gmra.mrb[0].mxu0 %v58
  %v195 = vpop.f32.mrb[0].mxu0
  %v196 = vadd.f32 %v45, %v195
  %v197 = vpop.f32.mrb[0].mxu0
  %198 = vmatprep.mubr.f32.mxu0 0.0
  %199 = vmatmul.mubr.f32.gmra.mrb[0].mxu0 %v61
  %v200 = vpop.f32.mrb[0].mxu0
  %v201 = vadd.f32 %v45, %v200
  %v202 = vpop.f32.mrb[0].mxu0
  %203 = vmatprep.mubr.f32.mxu0 0.0
  %204 = vmatmul.mubr.f32.gmra.mrb[0].mxu0 %v64
  %v205 = vpop.f32.mrb[0].mxu0
  %v206 = vadd.f32 %v45, %v205
  %v207 = vpop.f32.mrb[0].mxu0
  %208 = vmatprep.mubr.f32.mxu0 0.0
  %209 = vmatmul.mubr.f32.gmra.mrb[0].mxu0 %v67
  %v210 = vpop.f32.mrb[0].mxu0
  %v211 = vadd.f32 %v45, %v210
  %v212 = vpop.f32.mrb[0].mxu0
  %213 = vmatprep.mubr.f32.mxu0 0.0
  %214 = vmatmul.mubr.f32.gmra.mrb[0].mxu0 %v70
  %v215 = vpop.f32.mrb[0].mxu0
  %v216 = vadd.f32 %v45, %v215
  %v217 = vpop.f32.mrb[0].mxu0
  %218 = vmatprep.mubr.f32.mxu0 0.0
  %219 = vmatmul.mubr.f32.gmra.mrb[0].mxu0 %v73
  %v220 = vpop.f32.mrb[0].mxu0
  %v221 = vadd.f32 %v45, %v220
  %v222 = vpop.f32.mrb[0].mxu0
  %223 = vmatprep.mubr.f32.mxu0 0.0
  %224 = vmatmul.mubr.f32.gmra.mrb[0].mxu0 %v76
  %v225 = vpop.f32.mrb[0].mxu0
  %v226 = vadd.f32 %v45, %v225
  %v227 = vpop.f32.mrb[0].mxu0
  %228 = vmatprep.mubr.f32.mxu0 0.0
  %229 = vmatmul.mubr.f32.gmra.mrb[0].mxu0 %v79
  %v230 = vpop.f32.mrb[0].mxu0
  %v231 = vadd.f32 %v45, %v230
  %v232 = vpop.f32.mrb[0].mxu0
  %233 = vmatprep.mubr.f32.mxu0 0.0
  %234 = vmatmul.mubr.f32.gmra.mrb[0].mxu0 %v82
  %v235 = vpop.f32.mrb[0].mxu0
  %v236 = vadd.f32 %v45, %v235
  %v237 = vpop.f32.mrb[0].mxu0
  %238 = vmatprep.mubr.f32.mxu0 0.0
  %239 = vmatmul.mubr.f32.gmra.mrb[0].mxu0 %v85
  %v240 = vpop.f32.mrb[0].mxu0
  %v241 = vadd.f32 %v45, %v240
  %v242 = vpop.f32.mrb[0].mxu0
  %243 = vmatprep.mubr.f32.mxu0 0.0
  %244 = vmatmul.mubr.f32.gmra.mrb[0].mxu0 %v88
  %v245 = vpop.f32.mrb[0].mxu0
  %v246 = vadd.f32 %v45, %v245
  %v247 = vpop.f32.mrb[0].mxu0
  %248 = vmatprep.mubr.f32.mxu0 0.0
  %249 = vmatmul.mubr.f32.gmra.mrb[0].mxu0 %v91
  %v250 = vpop.f32.mrb[0].mxu0
  %v251 = vadd.f32 %v45, %v250
  %v252 = vpop.f32.mrb[0].mxu0
  %253 = vmatprep.mubr.f32.mxu0 0.0
  %254 = vmatmul.mubr.f32.gmra.mrb[0].mxu0 %v94
  %v255 = vpop.f32.mrb[0].mxu0
  %v256 = vadd.f32 %v45, %v255
  %v257 = vpop.f32.mrb[0].mxu0
  %258 = vmatprep.mubr.f32.mxu0 0.0
  %259 = vmatmul.mubr.f32.gmra.mrb[0].mxu0 %v97
  %v260 = vpop.f32.mrb[0].mxu0
  %v261 = vadd.f32 %v45, %v260
  %v262 = vpop.f32.mrb[0].mxu0
  %263 = vmatprep.mubr.f32.mxu0 0.0
  %264 = vmatmul.mubr.f32.gmra.mrb[0].mxu0 %v100
  %v265 = vpop.f32.mrb[0].mxu0
  %v266 = vadd.f32 %v45, %v265
  %v267 = vpop.f32.mrb[0].mxu0
  %268 = vmatprep.mubr.f32.mxu0 0.0
  %269 = vmatmul.mubr.f32.gmra.mrb[0].mxu0 %v103
  %v270 = vpop.f32.mrb[0].mxu0
  %v271 = vadd.f32 %v45, %v270
  %v272 = vpop.f32.mrb[0].mxu0
  %273 = vmatprep.mubr.f32.mxu0 0.0
  %274 = vmatmul.mubr.f32.gmra.mrb[0].mxu0 %v106
  %v275 = vpop.f32.mrb[0].mxu0
  %v276 = vadd.f32 %v45, %v275
  %v277 = vpop.f32.mrb[0].mxu0
  %278 = vmatprep.mubr.f32.mxu0 0.0
  %279 = vmatmul.mubr.f32.gmra.mrb[0].mxu0 %v109
  %v280 = vpop.f32.mrb[0].mxu0
  %v281 = vadd.f32 %v45, %v280
  %v282 = vpop.f32.mrb[0].mxu0
  %283 = vmatprep.mubr.f32.mxu0 0.0
  %284 = vmatmul.mubr.f32.gmra.mrb[0].mxu0 %v112
  %v285 = vpop.f32.mrb[0].mxu0
  %v286 = vadd.f32 %v45, %v285
  %v287 = vpop.f32.mrb[0].mxu0
  %288 = vdwg.mxu0
  %289 = vst.msk [vmem:[%s3] sm:$0xff] %vm47, %v181
  %290 = vst.msk [vmem:[%s3 + $0x8] sm:$0xff] %vm47, %v186
  %291 = vst.msk [vmem:[%s3 + $0x10] sm:$0xff] %vm47, %v191
  %292 = vst.msk [vmem:[%s3 + $0x18] sm:$0xff] %vm47, %v196
  %293 = vst.msk [vmem:[%s3 + $0x20] sm:$0xff] %vm47, %v201
  %294 = vst.msk [vmem:[%s3 + $0x28] sm:$0xff] %vm47, %v206
  %295 = vst.msk [vmem:[%s3 + $0x30] sm:$0xff] %vm47, %v211
  %296 = vst.msk [vmem:[%s3 + $0x38] sm:$0xff] %vm47, %v216
  %297 = vst.msk [vmem:[%s3 + $0x40] sm:$0xff] %vm47, %v221
  %298 = vst.msk [vmem:[%s3 + $0x48] sm:$0xff] %vm47, %v226
  %299 = vst.msk [vmem:[%s3 + $0x50] sm:$0xff] %vm47, %v231
  %300 = vst.msk [vmem:[%s3 + $0x58] sm:$0xff] %vm47, %v236
  %301 = vst.msk [vmem:[%s3 + $0x60] sm:$0xff] %vm47, %v241
  %302 = vst.msk [vmem:[%s3 + $0x68] sm:$0xff] %vm47, %v246
  %303 = vst.msk [vmem:[%s3 + $0x70] sm:$0xff] %vm47, %v251
  %304 = vst.msk [vmem:[%s3 + $0x78] sm:$0xff] %vm47, %v256
  %305 = vst.msk [vmem:[%s3 + $0x80] sm:$0xff] %vm47, %v261
  %306 = vst.msk [vmem:[%s3 + $0x88] sm:$0xff] %vm47, %v266
  %307 = vst.msk [vmem:[%s3 + $0x90] sm:$0xff] %vm47, %v271
  %308 = vst.msk [vmem:[%s3 + $0x98] sm:$0xff] %vm47, %v276
  %309 = vst.msk [vmem:[%s3 + $0xa0] sm:$0xff] %vm47, %v281
  %310 = vst.msk [vmem:[%s3 + $0xa8] sm:$0xff] %vm47, %v286
  // Predicated region
  $region14: #{tpu_custom_call.1} parent=0 // pred_check
    _
  $region15: #{tpu_custom_call.1} parent=0 // pred_check_branch
    %312 = sbr.rel (0) target = $region17
  $region16: #{tpu_custom_call.1} parent=0 // pred_region
    _
  $region17: #{tpu_custom_call.1} parent=0 // pred_fallthru
    _
  // Predicated region
  $region18: #{tpu_custom_call.1} parent=0 // pred_check
    _
  $region19: #{tpu_custom_call.1} parent=0 // pred_check_branch
    %314 = sbr.rel (0) target = $region21
  $region20: #{tpu_custom_call.1} parent=0 // pred_region
    _
  $region21: #{tpu_custom_call.1} parent=0 // pred_fallthru
    _

</llo_original>
